<compile_context>
chip_gen: v7x
topology: tpu7x:2x2x1
jax: 0.10.0
libtpu: 0.0.40
codegen_flags: <defaults>
</compile_context>

<pallas_src>
import jax
import jax.numpy as jnp
from jax.experimental import pallas as pl
from jax.experimental.pallas import tpu as pltpu

_PIXELS = 28 * 28            # 784
_GROUP = 8                   # samples per lane-dense row: 8*784 = 6272 = 49*128
_TILE_SAMPLES = 1024         # samples per grid step (128 lane-dense rows)
_SMALL_BYPASS_BYTES = 1 << 20  # below ~1 MiB of total traffic, skip Pallas


def _round_up(n: int, m: int) -> int:
    return ((n + m - 1) // m) * m


def _lambda_cast_kernel(x_ref, o_ref):
    # Pure copy with cast to the output dtype (float32), matching the
    # torch.Tensor(...) default-dtype materialization.
    o_ref[...] = x_ref[...].astype(o_ref.dtype)


def _pallas_cast_to_f32(x2d: jax.Array, tile_rows: int) -> jax.Array:
    R, C = x2d.shape
    in_bytes = x2d.dtype.itemsize
    return pl.pallas_call(
        _lambda_cast_kernel,
        out_shape=jax.ShapeDtypeStruct((R, C), jnp.float32),
        grid=(pl.cdiv(R, tile_rows),),
        in_specs=[pl.BlockSpec((tile_rows, C), lambda i: (i, 0))],
        out_specs=pl.BlockSpec((tile_rows, C), lambda i: (i, 0)),
        compiler_params=pltpu.CompilerParams(
            dimension_semantics=("parallel",)),
        cost_estimate=pl.CostEstimate(
            flops=0,
            transcendentals=0,
            bytes_accessed=R * C * (in_bytes + 4)),
    )(x2d)


def lambda_forward(x: jax.Array) -> jax.Array:
    """Equivalent of Lambda(lambda x: x.view(-1, 1, 28, 28)).forward(x)."""
    # Glue: flatten whatever comes in to (B, 784) rows.
    x_flat = x.reshape(-1, _PIXELS)
    B = x_flat.shape[0]

    # torch.Tensor(...) materializes at float32.  If the input already is
    # float32 this whole module is a metadata-only reshape: no kernel, no
    # HBM round-trip.
    if x_flat.dtype == jnp.float32:
        return x_flat.reshape(-1, 1, 28, 28)

    # Small-batch bypass: for typical MNIST batch sizes the Pallas custom-call
    # launch + pipeline prologue dominates the tiny amount of traffic; XLA's
    # convert is already at the HBM roofline for this.
    total_bytes = B * _PIXELS * (x_flat.dtype.itemsize + 4)
    if total_bytes < _SMALL_BYPASS_BYTES:
        return x_flat.astype(jnp.float32).reshape(-1, 1, 28, 28)

    # Genuine dtype cast on a large batch -> tiled Pallas copy/cast kernel.
    # Always use the lane-dense 6272-wide layout: pad B to a multiple of 8
    # (negligible cost) instead of the masked (B, 784) fallback.
    B_pad = _round_up(B, _GROUP)
    if B_pad != B:
        x_flat = jnp.pad(x_flat, ((0, B_pad - B), (0, 0)))

    rows = B_pad // _GROUP
    x2d = x_flat.reshape(rows, _GROUP * _PIXELS)   # last dim 6272 = 49*128

    # Tile choice: at least 2 balanced grid steps (so v7x's two TensorCores
    # both get work under the "parallel" axis), each a multiple of 8 sublanes,
    # capped at _TILE_SAMPLES samples per step (VMEM-safe on v5e/v6e/v7x).
    max_tile_rows = _TILE_SAMPLES // _GROUP        # 128 lane-dense rows
    tile_rows = min(max_tile_rows, _round_up(pl.cdiv(rows, 2), 8))

    y2d = _pallas_cast_to_f32(x2d, tile_rows)

    # Glue: the `func` reshape to NCHW (torch .view semantics) + un-pad.
    y = y2d.reshape(-1, 1, 28, 28)
    if B_pad != B:
        y = y[:B]
    return y
    # TODO(synk): `Lambda` accepts an arbitrary `func`; only the canonical
    # MNIST preprocess (view to NCHW + default-dtype materialization) is
    # implemented here.


if __name__ == "__main__":
    key = jax.random.PRNGKey(0)
    k1, k2, k3 = jax.random.split(key, 3)

    # Path 1: float32 input -> metadata-only reshape (no kernel needed).
    x_f32 = jax.random.uniform(k1, (2, _PIXELS), dtype=jnp.float32)
    out_f32 = jax.block_until_ready(lambda_forward(x_f32))
    assert out_f32.shape == (2, 1, 28, 28), out_f32.shape
    assert out_f32.dtype == jnp.float32, out_f32.dtype
    assert bool(jnp.all(out_f32 == x_f32.reshape(-1, 1, 28, 28)))

    # Path 2: small bf16 batch -> XLA convert bypass (launch overhead dominates).
    x_small = jax.random.uniform(k2, (8, _PIXELS), dtype=jnp.float32).astype(jnp.bfloat16)
    out_small = jax.block_until_ready(lambda_forward(x_small))
    assert out_small.shape == (8, 1, 28, 28), out_small.shape
    assert out_small.dtype == jnp.float32, out_small.dtype
    assert bool(jnp.all(out_small == x_small.astype(jnp.float32).reshape(-1, 1, 28, 28)))

    # Path 3: larger bf16 batch, B not a multiple of 8 -> pad-to-8, lane-dense
    # Pallas cast kernel with a >=2-step parallel grid, then un-pad.
    B_big = 270
    x_big = jax.random.uniform(k3, (B_big, _PIXELS), dtype=jnp.float32).astype(jnp.bfloat16)
    out_big = jax.block_until_ready(lambda_forward(x_big))
    assert out_big.shape == (B_big, 1, 28, 28), out_big.shape
    assert out_big.dtype == jnp.float32, out_big.dtype
    assert bool(jnp.all(out_big == x_big.astype(jnp.float32).reshape(-1, 1, 28, 28)))

    print("KERNEL_OK")
</pallas_src>

<mosaic_0001>
module attributes {stable_mosaic.version = 11 : i64} {
  func.func @_lambda_cast_kernel(%arg0: i32, %arg1: memref<24x6272xbf16, #tpu.memory_space<vmem>>, %arg2: memref<24x6272xf32, #tpu.memory_space<vmem>>) attributes {dimension_semantics = [#tpu.dimension_semantics<parallel>], iteration_bounds = array<i64: 2>, scalar_prefetch = 0 : i64, scratch_operands = 0 : i64, tpu.core_type = #tpu.core_type<tc>, window_params = [{transform_indices = @transform_0, window_bounds = array<i64: 24, 6272>}, {transform_indices = @transform_1, window_bounds = array<i64: 24, 6272>}]} {
    %c0 = arith.constant 0 : index
    %c0_0 = arith.constant 0 : index
    %0 = vector.load %arg1[%c0, %c0_0] : memref<24x6272xbf16, #tpu.memory_space<vmem>>, vector<24x6272xbf16>
    %1 = arith.extf %0 : vector<24x6272xbf16> to vector<24x6272xf32>
    %c0_1 = arith.constant 0 : index
    %c0_2 = arith.constant 0 : index
    %2 = vector.load %arg2[%c0_1, %c0_2] : memref<24x6272xf32, #tpu.memory_space<vmem>>, vector<24x6272xf32>
    tpu.vector_store %arg2[%c0_1, %c0_2], %1 {strides = array<i32>} : memref<24x6272xf32, #tpu.memory_space<vmem>>, vector<24x6272xf32>,
    return
  }
  func.func @transform_0(%arg0: i32) -> (i32, i32) {
    %c0_i32 = arith.constant 0 : i32
    %c0_i32_0 = arith.constant 0 : i32
    return %arg0, %c0_i32 : i32, i32
  }
  func.func @transform_1(%arg0: i32) -> (i32, i32) {
    %c0_i32 = arith.constant 0 : i32
    %c0_i32_0 = arith.constant 0 : i32
    return %arg0, %c0_i32 : i32, i32
  }
}

</mosaic_0001>

<llo_original>
// kernel: tpu_custom_call.1
$region0: #{tpu_custom_call.1}
  #allocation0 [shape = 'u32[]', space=smem, size = 0x4, offset = 0x4, fixed_abs, tag = 'smem constant byte address 0x4 - core index']
  #allocation1 [shape = 'u32[144,128]{1,0:T(1,128)}', space=vmem, size = 0x12000, scoped, tag = 'internal scratch']
  %s0 = inlined_call_operand.hbm [shape: bf16[34,6272], index: 0, kind: input, shape index: {}]
  %s1 = inlined_call_operand.hbm [shape: f32[34,6272], index: 1, kind: output, shape index: {}]
  %s2 = sld [smem:[#allocation0]]
  $region41: #{tpu_custom_call.1} parent=0
    _
  %s4 = ssub.s32 1, %s2
  %s5 = scalar_select 0, %s4, %s2
  $region1: #{tpu_custom_call.1} parent=0
    #allocation2 [shape = 'u8[602112]{0}', space=vmem, size = 0x93000, scoped, tag = 'input window, operand 0']
    #allocation3 [shape = 's32[2]{0}', space=sflag, size = 0x8, scoped, tag = 'scoped memory for tpu_custom_call.1']
    #allocation4 [shape = 's32[2]{0}', space=sflag, size = 0x8, scoped, tag = 'scoped memory for tpu_custom_call.1']
    #allocation5 [shape = 'u8[1204224]{0}', space=vmem, size = 0x126000, scoped, tag = 'output window, operand 0']
    %6 = vsyncpa [#allocation3], 0
    %s7 = scalar_lea.sflag [#allocation3], 1
    %8 = vsyncpa %s7, 0
    %9 = vsyncpa [#allocation4], 0
    %s10 = scalar_lea.sflag [#allocation4], 1
    %11 = vsyncpa %s10, 0
    loop: start=0, step=1, limit=4
    $region2: #{tpu_custom_call.1} parent=1 // loop_pre_header
      _
    $region3: #{tpu_custom_call.1} parent=1 // loop_header
      %s13 = sphi 0, %s17
      %p14 = scmp.ge.s32.totalorder %s13, 4
      %s23 = sphi 0, %s25
      %s26 = sphi 0, %s23
      %s27 = sphi 0, %s26
      %s43 = sphi 0, %s27
      %s49 = sphi 0, %s51
      %s52 = sphi 0, %s49
      %s53 = sphi 0, %s52
      %s69 = sphi 0, %s53
    $region4: #{tpu_custom_call.1} parent=1 // loop_header_branch
      %16 = sbr.rel (%p14) target = $region8
    $region5: #{tpu_custom_call.1} parent=1 // loop_body
      %s18 = ssub.s32 %s13, 1
      %s19 = ssub.s32 %s13, 2
      %s20 = sadd.s32 %s13, 1
      %s21 = ssub.s32 %s13, %s20
      %p22 = scmp.eq.s32.totalorder %s21, 0
      %s24 = sadd.s32 %s23, 1
      %s25 = scalar_select %p22, %s23, %s24
      %p28 = pneg %p22
      %p29 = scmp.eq.s32.totalorder %s13, 1
      %p30 = por %p28, %p29
      %p31 = scmp.ne.s32.totalorder %s23, %s26
      %p32 = scmp.eq.s32.totalorder %s13, 0
      %p33 = por %p31, %p32
      %p34 = scmp.ne.s32.totalorder %s23, %s26
      %p35 = scmp.eq.s32.totalorder %s18, 1
      %p36 = por %p34, %p35
      %p37 = scmp.ne.s32.totalorder %s26, %s27
      %p38 = scmp.eq.s32.totalorder %s18, 0
      %p39 = por %p37, %p38
      %p40 = scmp.ne.s32.totalorder %s26, %s27
      %p41 = scmp.eq.s32.totalorder %s19, 1
      %p42 = por %p40, %p41
      %p44 = scmp.ne.s32.totalorder %s27, %s43
      %p45 = scmp.eq.s32.totalorder %s19, 0
      %p46 = por %p44, %p45
      %s47 = ssub.s32 %s13, %s20
      %p48 = scmp.eq.s32.totalorder %s47, 0
      %s50 = sadd.s32 %s49, 1
      %s51 = scalar_select %p48, %s49, %s50
      %p54 = pneg %p48
      %p55 = scmp.eq.s32.totalorder %s13, 1
      %p56 = por %p54, %p55
      %p57 = scmp.ne.s32.totalorder %s49, %s52
      %p58 = scmp.eq.s32.totalorder %s13, 0
      %p59 = por %p57, %p58
      %p60 = scmp.ne.s32.totalorder %s49, %s52
      %p61 = scmp.eq.s32.totalorder %s18, 1
      %p62 = por %p60, %p61
      %p63 = scmp.ne.s32.totalorder %s52, %s53
      %p64 = scmp.eq.s32.totalorder %s18, 0
      %p65 = por %p63, %p64
      %p66 = scmp.ne.s32.totalorder %s52, %s53
      %p67 = scmp.eq.s32.totalorder %s19, 1
      %p68 = por %p66, %p67
      %p70 = scmp.ne.s32.totalorder %s53, %s69
      %p71 = scmp.eq.s32.totalorder %s19, 0
      %p72 = por %p70, %p71
      %p73 = scmp.le.s32.totalorder 1, %s13
      %p74 = scmp.lt.s32.totalorder %s13, 3
      %p75 = pnand %p73, %p74
      %p76 = pneg %p75
      // Predicated region
      $region9: #{tpu_custom_call.1} parent=5 // pred_check
        _
      $region10: #{tpu_custom_call.1} parent=5 // pred_check_branch
        %78 = sbr.rel (%p75) target = $region12
      $region11: #{tpu_custom_call.1} parent=5 // pred_region
        %s79 = ssub.s32 %s13, 1
      $region12: #{tpu_custom_call.1} parent=5 // pred_fallthru
        _
      %p80 = scmp.lt.s32.totalorder %s13, 2
      // Predicated region
      $region13: #{tpu_custom_call.1} parent=5 // pred_check
        %p81 = pneg %p80
      $region14: #{tpu_custom_call.1} parent=5 // pred_check_branch
        %83 = sbr.rel (%p81) target = $region16
      $region15: #{tpu_custom_call.1} parent=5 // pred_region
        // Predicated region
        $region17: #{tpu_custom_call.1} parent=15 // pred_check
          %p84 = pneg %p33
        $region18: #{tpu_custom_call.1} parent=15 // pred_check_branch
          %86 = sbr.rel (%p84) target = $region20
        $region19: #{tpu_custom_call.1} parent=15 // pred_region
          %s87 = sand.u32 %s23, 1
          %s88 = scalar_lea.sflag [#allocation3], %s87
          %s89 = sand.u32 %s23, 1
          %s90 = smul.addr %s89, 588
          %s91 = scalar_lea.vmem [#allocation2], %s90
          %s92 = smul.u32 3, %s13
          %s93 = ssub.s32 5, %s92
          %p94 = scmp.lt.s32.totalorder %s93, 3
          %s95 = scalar_select %p94, %s93, 3
          %s96 = smul.u32 64, %s95
          %s97 = smul.u32 %s96, 49
          %s99 = ssub.s32 9408, %s97
          %100 = vsyncadd %s88, %s99
          %p101 = scmp.ne.s32.totalorder 0, %s97
          %s102 = smul.addr %s92, 49
          %s103 = smul.addr %s102, 64
          %s104 = scalar_lea.hbm %s0, %s103
          %s105 = smul.u32 196, %s95
          %s106 = sshll.u32 %s91, 4
          %s107 = int_to_ptr.vmem [resolvable:$true] %s106
          %s108 = sshll.u32 %s105, 4
          %112 = dma.hbm_to_vmem [thread:$0]  (%p101), %s104, %s108, %s107, %s88, 3136, 3136, 196
        $region20: #{tpu_custom_call.1} parent=15 // pred_fallthru
          _
      $region16: #{tpu_custom_call.1} parent=5 // pred_fallthru
        _
      %p113 = scmp.le.s32.totalorder 1, %s13
      %p114 = scmp.lt.s32.totalorder %s13, 3
      %p115 = pnand %p113, %p114
      %p116 = pneg %p115
      // Predicated region
      $region21: #{tpu_custom_call.1} parent=5 // pred_check
        _
      $region22: #{tpu_custom_call.1} parent=5 // pred_check_branch
        %118 = sbr.rel (%p115) target = $region24
      $region23: #{tpu_custom_call.1} parent=5 // pred_region
        %s119 = ssub.s32 %s13, 1
        %s120 = sand.u32 %s26, 1
        %s121 = scalar_lea.sflag [#allocation3], %s120
        %s122 = sand.u32 %s26, 1
        %s123 = smul.addr %s122, 588
        %s124 = scalar_lea.vmem [#allocation2], %s123
        // Predicated region
        $region25: #{tpu_custom_call.1} parent=23 // pred_check
          %p125 = pneg %p39
        $region26: #{tpu_custom_call.1} parent=23 // pred_check_branch
          %127 = sbr.rel (%p125) target = $region28
        $region27: #{tpu_custom_call.1} parent=23 // pred_region
          %128 = dma.done %s121, 9408
        $region28: #{tpu_custom_call.1} parent=23 // pred_fallthru
          _
        %s129 = sand.u32 %s26, 1
        %s130 = scalar_lea.sflag [#allocation3], %s129
        %s131 = sand.u32 %s26, 1
        %s132 = smul.addr %s131, 588
        %s133 = scalar_lea.vmem [#allocation2], %s132
        %p134 = pneg %p39
        %p135 = pneg %p36
        %p136 = pneg %p65
        %p137 = pneg %p62
        %s138 = sand.u32 %s52, 1
        %s139 = scalar_lea.sflag [#allocation4], %s138
        %s140 = sand.u32 %s52, 1
        %s141 = smul.addr %s140, 1176
        %s142 = scalar_lea.vmem [#allocation5], %s141
        %s143 = smul.u32 3, %s18
        %s144 = ssub.s32 5, %s143
        %p145 = scmp.lt.s32.totalorder %s144, 3
        %s146 = scalar_select %p145, %s144, 3
        %s147 = smul.u32 64, %s146
        %s148 = smul.u32 %s147, 49
        %s149 = smul.u32 3, %s18
        %s150 = ssub.s32 5, %s149
        %p151 = scmp.lt.s32.totalorder %s150, 3
        %s152 = scalar_select %p151, %s150, 3
        %s153 = smul.u32 128, %s152
        %s154 = smul.u32 %s153, 49
        %v155 = vld [vmem:[%s124] sm:$0xff]
        %v156 = vld [vmem:[%s124 + $0x8] sm:$0xff]
        %v157 = vld [vmem:[%s124 + $0x10] sm:$0xff]
        %v158 = vld [vmem:[%s124 + $0x18] sm:$0xff]
        %v159 = vld [vmem:[%s124 + $0x20] sm:$0xff]
        %v160 = vld [vmem:[%s124 + $0x28] sm:$0xff]
        %v161 = vld [vmem:[%s124 + $0x30] sm:$0xff]
        %v162 = vld [vmem:[%s124 + $0x38] sm:$0xff]
        %v163 = vld [vmem:[%s124 + $0x40] sm:$0xff]
        %v164 = vld [vmem:[%s124 + $0x48] sm:$0xff]
        %v165 = vld [vmem:[%s124 + $0x50] sm:$0xff]
        %v166 = vld [vmem:[%s124 + $0x58] sm:$0xff]
        %v167 = vld [vmem:[%s124 + $0x60] sm:$0xff]
        %v168 = vld [vmem:[%s124 + $0x68] sm:$0xff]
        %v169 = vld [vmem:[%s124 + $0x70] sm:$0xff]
        %v170 = vld [vmem:[%s124 + $0x78] sm:$0xff]
        %v171 = vld [vmem:[%s124 + $0x80] sm:$0xff]
        %v172 = vld [vmem:[%s124 + $0x88] sm:$0xff]
        %v173 = vld [vmem:[%s124 + $0x90] sm:$0xff]
        %v174 = vld [vmem:[%s124 + $0x98] sm:$0xff]
        %v175 = vld [vmem:[%s124 + $0xa0] sm:$0xff]
        %v176 = vld [vmem:[%s124 + $0xa8] sm:$0xff]
        %v177 = vld [vmem:[%s124 + $0xb0] sm:$0xff]
        %v178 = vld [vmem:[%s124 + $0xb8] sm:$0xff]
        %v179 = vld [vmem:[%s124 + $0xc0] sm:$0xf]
        %v180 = vld [vmem:[%s124 + $0xc4] sm:$0xff]
        %v181 = vld [vmem:[%s124 + $0xcc] sm:$0xff]
        %v182 = vld [vmem:[%s124 + $0xd4] sm:$0xff]
        %v183 = vld [vmem:[%s124 + $0xdc] sm:$0xff]
        %v184 = vld [vmem:[%s124 + $0xe4] sm:$0xff]
        %v185 = vld [vmem:[%s124 + $0xec] sm:$0xff]
        %v186 = vld [vmem:[%s124 + $0xf4] sm:$0xff]
        %v187 = vld [vmem:[%s124 + $0xfc] sm:$0xff]
        %v188 = vld [vmem:[%s124 + $0x104] sm:$0xff]
        %v189 = vld [vmem:[%s124 + $0x10c] sm:$0xff]
        %v190 = vld [vmem:[%s124 + $0x114] sm:$0xff]
        %v191 = vld [vmem:[%s124 + $0x11c] sm:$0xff]
        %v192 = vld [vmem:[%s124 + $0x124] sm:$0xff]
        %v193 = vld [vmem:[%s124 + $0x12c] sm:$0xff]
        %v194 = vld [vmem:[%s124 + $0x134] sm:$0xff]
        %v195 = vld [vmem:[%s124 + $0x13c] sm:$0xff]
        %v196 = vld [vmem:[%s124 + $0x144] sm:$0xff]
        %v197 = vld [vmem:[%s124 + $0x14c] sm:$0xff]
        %v198 = vld [vmem:[%s124 + $0x154] sm:$0xff]
        %v199 = vld [vmem:[%s124 + $0x15c] sm:$0xff]
        %v200 = vld [vmem:[%s124 + $0x164] sm:$0xff]
        %v201 = vld [vmem:[%s124 + $0x16c] sm:$0xff]
        %v202 = vld [vmem:[%s124 + $0x174] sm:$0xff]
        %v203 = vld [vmem:[%s124 + $0x17c] sm:$0xff]
        %v204 = vld [vmem:[%s124 + $0x184] sm:$0xf]
        %v205 = vld [vmem:[%s124 + $0x188] sm:$0xff]
        %v206 = vld [vmem:[%s124 + $0x190] sm:$0xff]
        %v207 = vld [vmem:[%s124 + $0x198] sm:$0xff]
        %v208 = vld [vmem:[%s124 + $0x1a0] sm:$0xff]
        %v209 = vld [vmem:[%s124 + $0x1a8] sm:$0xff]
        %v210 = vld [vmem:[%s124 + $0x1b0] sm:$0xff]
        %v211 = vld [vmem:[%s124 + $0x1b8] sm:$0xff]
        %v212 = vld [vmem:[%s124 + $0x1c0] sm:$0xff]
        %v213 = vld [vmem:[%s124 + $0x1c8] sm:$0xff]
        %v214 = vld [vmem:[%s124 + $0x1d0] sm:$0xff]
        %v215 = vld [vmem:[%s124 + $0x1d8] sm:$0xff]
        %v216 = vld [vmem:[%s124 + $0x1e0] sm:$0xff]
        %v217 = vld [vmem:[%s124 + $0x1e8] sm:$0xff]
        %v218 = vld [vmem:[%s124 + $0x1f0] sm:$0xff]
        %v219 = vld [vmem:[%s124 + $0x1f8] sm:$0xff]
        %v220 = vld [vmem:[%s124 + $0x200] sm:$0xff]
        %v221 = vld [vmem:[%s124 + $0x208] sm:$0xff]
        %v222 = vld [vmem:[%s124 + $0x210] sm:$0xff]
        %v223 = vld [vmem:[%s124 + $0x218] sm:$0xff]
        %v224 = vld [vmem:[%s124 + $0x220] sm:$0xff]
        %v225 = vld [vmem:[%s124 + $0x228] sm:$0xff]
        %v226 = vld [vmem:[%s124 + $0x230] sm:$0xff]
        %v227 = vld [vmem:[%s124 + $0x238] sm:$0xff]
        %v228 = vld [vmem:[%s124 + $0x240] sm:$0xff]
        %v229 = vld [vmem:[%s124 + $0x248] sm:$0xf]
        %v230 = vunpack.c.l.bf16 %v155
        %v231 = vunpack.c.h.bf16 %v155
        %v232 = vunpack.c.l.bf16 %v156
        %v233 = vunpack.c.h.bf16 %v156
        %v234 = vunpack.c.l.bf16 %v157
        %v235 = vunpack.c.h.bf16 %v157
        %v236 = vunpack.c.l.bf16 %v158
        %v237 = vunpack.c.h.bf16 %v158
        %v238 = vunpack.c.l.bf16 %v159
        %v239 = vunpack.c.h.bf16 %v159
        %v240 = vunpack.c.l.bf16 %v160
        %v241 = vunpack.c.h.bf16 %v160
        %v242 = vunpack.c.l.bf16 %v161
        %v243 = vunpack.c.h.bf16 %v161
        %v244 = vunpack.c.l.bf16 %v162
        %v245 = vunpack.c.h.bf16 %v162
        %v246 = vunpack.c.l.bf16 %v163
        %v247 = vunpack.c.h.bf16 %v163
        %v248 = vunpack.c.l.bf16 %v164
        %v249 = vunpack.c.h.bf16 %v164
        %v250 = vunpack.c.l.bf16 %v165
        %v251 = vunpack.c.h.bf16 %v165
        %v252 = vunpack.c.l.bf16 %v166
        %v253 = vunpack.c.h.bf16 %v166
        %v254 = vunpack.c.l.bf16 %v167
        %v255 = vunpack.c.h.bf16 %v167
        %v256 = vunpack.c.l.bf16 %v168
        %v257 = vunpack.c.h.bf16 %v168
        %v258 = vunpack.c.l.bf16 %v169
        %v259 = vunpack.c.h.bf16 %v169
        %v260 = vunpack.c.l.bf16 %v170
        %v261 = vunpack.c.h.bf16 %v170
        %v262 = vunpack.c.l.bf16 %v171
        %v263 = vunpack.c.h.bf16 %v171
        %v264 = vunpack.c.l.bf16 %v172
        %v265 = vunpack.c.h.bf16 %v172
        %v266 = vunpack.c.l.bf16 %v173
        %v267 = vunpack.c.h.bf16 %v173
        %v268 = vunpack.c.l.bf16 %v174
        %v269 = vunpack.c.h.bf16 %v174
        %v270 = vunpack.c.l.bf16 %v175
        %v271 = vunpack.c.h.bf16 %v175
        %v272 = vunpack.c.l.bf16 %v176
        %v273 = vunpack.c.h.bf16 %v176
        %v274 = vunpack.c.l.bf16 %v177
        %v275 = vunpack.c.h.bf16 %v177
        %v276 = vunpack.c.l.bf16 %v178
        %v277 = vunpack.c.h.bf16 %v178
        %v278 = vunpack.c.l.bf16 %v179
        %v279 = vunpack.c.l.bf16 %v180
        %v280 = vunpack.c.h.bf16 %v180
        %v281 = vunpack.c.l.bf16 %v181
        %v282 = vunpack.c.h.bf16 %v181
        %v283 = vunpack.c.l.bf16 %v182
        %v284 = vunpack.c.h.bf16 %v182
        %v285 = vunpack.c.l.bf16 %v183
        %v286 = vunpack.c.h.bf16 %v183
        %v287 = vunpack.c.l.bf16 %v184
        %v288 = vunpack.c.h.bf16 %v184
        %v289 = vunpack.c.l.bf16 %v185
        %v290 = vunpack.c.h.bf16 %v185
        %v291 = vunpack.c.l.bf16 %v186
        %v292 = vunpack.c.h.bf16 %v186
        %v293 = vunpack.c.l.bf16 %v187
        %v294 = vunpack.c.h.bf16 %v187
        %v295 = vunpack.c.l.bf16 %v188
        %v296 = vunpack.c.h.bf16 %v188
        %v297 = vunpack.c.l.bf16 %v189
        %v298 = vunpack.c.h.bf16 %v189
        %v299 = vunpack.c.l.bf16 %v190
        %v300 = vunpack.c.h.bf16 %v190
        %v301 = vunpack.c.l.bf16 %v191
        %v302 = vunpack.c.h.bf16 %v191
        %v303 = vunpack.c.l.bf16 %v192
        %v304 = vunpack.c.h.bf16 %v192
        %v305 = vunpack.c.l.bf16 %v193
        %v306 = vunpack.c.h.bf16 %v193
        %v307 = vunpack.c.l.bf16 %v194
        %v308 = vunpack.c.h.bf16 %v194
        %v309 = vunpack.c.l.bf16 %v195
        %v310 = vunpack.c.h.bf16 %v195
        %v311 = vunpack.c.l.bf16 %v196
        %v312 = vunpack.c.h.bf16 %v196
        %v313 = vunpack.c.l.bf16 %v197
        %v314 = vunpack.c.h.bf16 %v197
        %v315 = vunpack.c.l.bf16 %v198
        %v316 = vunpack.c.h.bf16 %v198
        %v317 = vunpack.c.l.bf16 %v199
        %v318 = vunpack.c.h.bf16 %v199
        %v319 = vunpack.c.l.bf16 %v200
        %v320 = vunpack.c.h.bf16 %v200
        %v321 = vunpack.c.l.bf16 %v201
        %v322 = vunpack.c.h.bf16 %v201
        %v323 = vunpack.c.l.bf16 %v202
        %v324 = vunpack.c.h.bf16 %v202
        %v325 = vunpack.c.l.bf16 %v203
        %v326 = vunpack.c.h.bf16 %v203
        %v327 = vunpack.c.l.bf16 %v204
        %v328 = vunpack.c.l.bf16 %v205
        %v329 = vunpack.c.h.bf16 %v205
        %v330 = vunpack.c.l.bf16 %v206
        %v331 = vunpack.c.h.bf16 %v206
        %v332 = vunpack.c.l.bf16 %v207
        %v333 = vunpack.c.h.bf16 %v207
        %v334 = vunpack.c.l.bf16 %v208
        %v335 = vunpack.c.h.bf16 %v208
        %v336 = vunpack.c.l.bf16 %v209
        %v337 = vunpack.c.h.bf16 %v209
        %v338 = vunpack.c.l.bf16 %v210
        %v339 = vunpack.c.h.bf16 %v210
        %v340 = vunpack.c.l.bf16 %v211
        %v341 = vunpack.c.h.bf16 %v211
        %v342 = vunpack.c.l.bf16 %v212
        %v343 = vunpack.c.h.bf16 %v212
        %v344 = vunpack.c.l.bf16 %v213
        %v345 = vunpack.c.h.bf16 %v213
        %v346 = vunpack.c.l.bf16 %v214
        %v347 = vunpack.c.h.bf16 %v214
        %v348 = vunpack.c.l.bf16 %v215
        %v349 = vunpack.c.h.bf16 %v215
        %v350 = vunpack.c.l.bf16 %v216
        %v351 = vunpack.c.h.bf16 %v216
        %v352 = vunpack.c.l.bf16 %v217
        %v353 = vunpack.c.h.bf16 %v217
        %v354 = vunpack.c.l.bf16 %v218
        %v355 = vunpack.c.h.bf16 %v218
        %v356 = vunpack.c.l.bf16 %v219
        %v357 = vunpack.c.h.bf16 %v219
        %v358 = vunpack.c.l.bf16 %v220
        %v359 = vunpack.c.h.bf16 %v220
        %v360 = vunpack.c.l.bf16 %v221
        %v361 = vunpack.c.h.bf16 %v221
        %v362 = vunpack.c.l.bf16 %v222
        %v363 = vunpack.c.h.bf16 %v222
        %v364 = vunpack.c.l.bf16 %v223
        %v365 = vunpack.c.h.bf16 %v223
        %v366 = vunpack.c.l.bf16 %v224
        %v367 = vunpack.c.h.bf16 %v224
        %v368 = vunpack.c.l.bf16 %v225
        %v369 = vunpack.c.h.bf16 %v225
        %v370 = vunpack.c.l.bf16 %v226
        %v371 = vunpack.c.h.bf16 %v226
        %v372 = vunpack.c.l.bf16 %v227
        %v373 = vunpack.c.h.bf16 %v227
        %v374 = vunpack.c.l.bf16 %v228
        %v375 = vunpack.c.h.bf16 %v228
        %v376 = vunpack.c.l.bf16 %v229
        %377 = vst [vmem:[%s142] sm:$0xff] %v230
        %378 = vst [vmem:[%s142 + $0x8] sm:$0xff] %v231
        %379 = vst [vmem:[%s142 + $0x10] sm:$0xff] %v232
        %380 = vst [vmem:[%s142 + $0x18] sm:$0xff] %v233
        %381 = vst [vmem:[%s142 + $0x20] sm:$0xff] %v234
        %382 = vst [vmem:[%s142 + $0x28] sm:$0xff] %v235
        %383 = vst [vmem:[%s142 + $0x30] sm:$0xff] %v236
        %384 = vst [vmem:[%s142 + $0x38] sm:$0xff] %v237
        %385 = vst [vmem:[%s142 + $0x40] sm:$0xff] %v238
        %386 = vst [vmem:[%s142 + $0x48] sm:$0xff] %v239
        %387 = vst [vmem:[%s142 + $0x50] sm:$0xff] %v240
        %388 = vst [vmem:[%s142 + $0x58] sm:$0xff] %v241
        %389 = vst [vmem:[%s142 + $0x60] sm:$0xff] %v242
        %390 = vst [vmem:[%s142 + $0x68] sm:$0xff] %v243
        %391 = vst [vmem:[%s142 + $0x70] sm:$0xff] %v244
        %392 = vst [vmem:[%s142 + $0x78] sm:$0xff] %v245
        %393 = vst [vmem:[%s142 + $0x80] sm:$0xff] %v246
        %394 = vst [vmem:[%s142 + $0x88] sm:$0xff] %v247
        %395 = vst [vmem:[%s142 + $0x90] sm:$0xff] %v248
        %396 = vst [vmem:[%s142 + $0x98] sm:$0xff] %v249
        %397 = vst [vmem:[%s142 + $0xa0] sm:$0xff] %v250
        %398 = vst [vmem:[%s142 + $0xa8] sm:$0xff] %v251
        %399 = vst [vmem:[%s142 + $0xb0] sm:$0xff] %v252
        %400 = vst [vmem:[%s142 + $0xb8] sm:$0xff] %v253
        %401 = vst [vmem:[%s142 + $0xc0] sm:$0xff] %v254
        %402 = vst [vmem:[%s142 + $0xc8] sm:$0xff] %v255
        %403 = vst [vmem:[%s142 + $0xd0] sm:$0xff] %v256
        %404 = vst [vmem:[%s142 + $0xd8] sm:$0xff] %v257
        %405 = vst [vmem:[%s142 + $0xe0] sm:$0xff] %v258
        %406 = vst [vmem:[%s142 + $0xe8] sm:$0xff] %v259
        %407 = vst [vmem:[%s142 + $0xf0] sm:$0xff] %v260
        %408 = vst [vmem:[%s142 + $0xf8] sm:$0xff] %v261
        %409 = vst [vmem:[%s142 + $0x100] sm:$0xff] %v262
        %410 = vst [vmem:[%s142 + $0x108] sm:$0xff] %v263
        %411 = vst [vmem:[%s142 + $0x110] sm:$0xff] %v264
        %412 = vst [vmem:[%s142 + $0x118] sm:$0xff] %v265
        %413 = vst [vmem:[%s142 + $0x120] sm:$0xff] %v266
        %414 = vst [vmem:[%s142 + $0x128] sm:$0xff] %v267
        %415 = vst [vmem:[%s142 + $0x130] sm:$0xff] %v268
        %416 = vst [vmem:[%s142 + $0x138] sm:$0xff] %v269
        %417 = vst [vmem:[%s142 + $0x140] sm:$0xff] %v270
        %418 = vst [vmem:[%s142 + $0x148] sm:$0xff] %v271
        %419 = vst [vmem:[%s142 + $0x150] sm:$0xff] %v272
        %420 = vst [vmem:[%s142 + $0x158] sm:$0xff] %v273
        %421 = vst [vmem:[%s142 + $0x160] sm:$0xff] %v274
        %422 = vst [vmem:[%s142 + $0x168] sm:$0xff] %v275
        %423 = vst [vmem:[%s142 + $0x170] sm:$0xff] %v276
        %424 = vst [vmem:[%s142 + $0x178] sm:$0xff] %v277
        %425 = vst [vmem:[%s142 + $0x180] sm:$0xff] %v278
        %426 = vst [vmem:[%s142 + $0x188] sm:$0xff] %v279
        %427 = vst [vmem:[%s142 + $0x190] sm:$0xff] %v280
        %428 = vst [vmem:[%s142 + $0x198] sm:$0xff] %v281
        %429 = vst [vmem:[%s142 + $0x1a0] sm:$0xff] %v282
        %430 = vst [vmem:[%s142 + $0x1a8] sm:$0xff] %v283
        %431 = vst [vmem:[%s142 + $0x1b0] sm:$0xff] %v284
        %432 = vst [vmem:[%s142 + $0x1b8] sm:$0xff] %v285
        %433 = vst [vmem:[%s142 + $0x1c0] sm:$0xff] %v286
        %434 = vst [vmem:[%s142 + $0x1c8] sm:$0xff] %v287
        %435 = vst [vmem:[%s142 + $0x1d0] sm:$0xff] %v288
        %436 = vst [vmem:[%s142 + $0x1d8] sm:$0xff] %v289
        %437 = vst [vmem:[%s142 + $0x1e0] sm:$0xff] %v290
        %438 = vst [vmem:[%s142 + $0x1e8] sm:$0xff] %v291
        %439 = vst [vmem:[%s142 + $0x1f0] sm:$0xff] %v292
        %440 = vst [vmem:[%s142 + $0x1f8] sm:$0xff] %v293
        %441 = vst [vmem:[%s142 + $0x200] sm:$0xff] %v294
        %442 = vst [vmem:[%s142 + $0x208] sm:$0xff] %v295
        %443 = vst [vmem:[%s142 + $0x210] sm:$0xff] %v296
        %444 = vst [vmem:[%s142 + $0x218] sm:$0xff] %v297
        %445 = vst [vmem:[%s142 + $0x220] sm:$0xff] %v298
        %446 = vst [vmem:[%s142 + $0x228] sm:$0xff] %v299
        %447 = vst [vmem:[%s142 + $0x230] sm:$0xff] %v300
        %448 = vst [vmem:[%s142 + $0x238] sm:$0xff] %v301
        %449 = vst [vmem:[%s142 + $0x240] sm:$0xff] %v302
        %450 = vst [vmem:[%s142 + $0x248] sm:$0xff] %v303
        %451 = vst [vmem:[%s142 + $0x250] sm:$0xff] %v304
        %452 = vst [vmem:[%s142 + $0x258] sm:$0xff] %v305
        %453 = vst [vmem:[%s142 + $0x260] sm:$0xff] %v306
        %454 = vst [vmem:[%s142 + $0x268] sm:$0xff] %v307
        %455 = vst [vmem:[%s142 + $0x270] sm:$0xff] %v308
        %456 = vst [vmem:[%s142 + $0x278] sm:$0xff] %v309
        %457 = vst [vmem:[%s142 + $0x280] sm:$0xff] %v310
        %458 = vst [vmem:[%s142 + $0x288] sm:$0xff] %v311
        %459 = vst [vmem:[%s142 + $0x290] sm:$0xff] %v312
        %460 = vst [vmem:[%s142 + $0x298] sm:$0xff] %v313
        %461 = vst [vmem:[%s142 + $0x2a0] sm:$0xff] %v314
        %462 = vst [vmem:[%s142 + $0x2a8] sm:$0xff] %v315
        %463 = vst [vmem:[%s142 + $0x2b0] sm:$0xff] %v316
        %464 = vst [vmem:[%s142 + $0x2b8] sm:$0xff] %v317
        %465 = vst [vmem:[%s142 + $0x2c0] sm:$0xff] %v318
        %466 = vst [vmem:[%s142 + $0x2c8] sm:$0xff] %v319
        %467 = vst [vmem:[%s142 + $0x2d0] sm:$0xff] %v320
        %468 = vst [vmem:[%s142 + $0x2d8] sm:$0xff] %v321
        %469 = vst [vmem:[%s142 + $0x2e0] sm:$0xff] %v322
        %470 = vst [vmem:[%s142 + $0x2e8] sm:$0xff] %v323
        %471 = vst [vmem:[%s142 + $0x2f0] sm:$0xff] %v324
        %472 = vst [vmem:[%s142 + $0x2f8] sm:$0xff] %v325
        %473 = vst [vmem:[%s142 + $0x300] sm:$0xff] %v326
        %474 = vst [vmem:[%s142 + $0x308] sm:$0xff] %v327
        %475 = vst [vmem:[%s142 + $0x310] sm:$0xff] %v328
        %476 = vst [vmem:[%s142 + $0x318] sm:$0xff] %v329
        %477 = vst [vmem:[%s142 + $0x320] sm:$0xff] %v330
        %478 = vst [vmem:[%s142 + $0x328] sm:$0xff] %v331
        %479 = vst [vmem:[%s142 + $0x330] sm:$0xff] %v332
        %480 = vst [vmem:[%s142 + $0x338] sm:$0xff] %v333
        %481 = vst [vmem:[%s142 + $0x340] sm:$0xff] %v334
        %482 = vst [vmem:[%s142 + $0x348] sm:$0xff] %v335
        %483 = vst [vmem:[%s142 + $0x350] sm:$0xff] %v336
        %484 = vst [vmem:[%s142 + $0x358] sm:$0xff] %v337
        %485 = vst [vmem:[%s142 + $0x360] sm:$0xff] %v338
        %486 = vst [vmem:[%s142 + $0x368] sm:$0xff] %v339
        %487 = vst [vmem:[%s142 + $0x370] sm:$0xff] %v340
        %488 = vst [vmem:[%s142 + $0x378] sm:$0xff] %v341
        %489 = vst [vmem:[%s142 + $0x380] sm:$0xff] %v342
        %490 = vst [vmem:[%s142 + $0x388] sm:$0xff] %v343
        %491 = vst [vmem:[%s142 + $0x390] sm:$0xff] %v344
        %492 = vst [vmem:[%s142 + $0x398] sm:$0xff] %v345
        %493 = vst [vmem:[%s142 + $0x3a0] sm:$0xff] %v346
        %494 = vst [vmem:[%s142 + $0x3a8] sm:$0xff] %v347
        %495 = vst [vmem:[%s142 + $0x3b0] sm:$0xff] %v348
        %496 = vst [vmem:[%s142 + $0x3b8] sm:$0xff] %v349
        %497 = vst [vmem:[%s142 + $0x3c0] sm:$0xff] %v350
        %498 = vst [vmem:[%s142 + $0x3c8] sm:$0xff] %v351
        %499 = vst [vmem:[%s142 + $0x3d0] sm:$0xff] %v352
        %500 = vst [vmem:[%s142 + $0x3d8] sm:$0xff] %v353
        %501 = vst [vmem:[%s142 + $0x3e0] sm:$0xff] %v354
        %502 = vst [vmem:[%s142 + $0x3e8] sm:$0xff] %v355
        %503 = vst [vmem:[%s142 + $0x3f0] sm:$0xff] %v356
        %504 = vst [vmem:[%s142 + $0x3f8] sm:$0xff] %v357
        %505 = vst [vmem:[%s142 + $0x400] sm:$0xff] %v358
        %506 = vst [vmem:[%s142 + $0x408] sm:$0xff] %v359
        %507 = vst [vmem:[%s142 + $0x410] sm:$0xff] %v360
        %508 = vst [vmem:[%s142 + $0x418] sm:$0xff] %v361
        %509 = vst [vmem:[%s142 + $0x420] sm:$0xff] %v362
        %510 = vst [vmem:[%s142 + $0x428] sm:$0xff] %v363
        %511 = vst [vmem:[%s142 + $0x430] sm:$0xff] %v364
        %512 = vst [vmem:[%s142 + $0x438] sm:$0xff] %v365
        %513 = vst [vmem:[%s142 + $0x440] sm:$0xff] %v366
        %514 = vst [vmem:[%s142 + $0x448] sm:$0xff] %v367
        %515 = vst [vmem:[%s142 + $0x450] sm:$0xff] %v368
        %516 = vst [vmem:[%s142 + $0x458] sm:$0xff] %v369
        %517 = vst [vmem:[%s142 + $0x460] sm:$0xff] %v370
        %518 = vst [vmem:[%s142 + $0x468] sm:$0xff] %v371
        %519 = vst [vmem:[%s142 + $0x470] sm:$0xff] %v372
        %520 = vst [vmem:[%s142 + $0x478] sm:$0xff] %v373
        %521 = vst [vmem:[%s142 + $0x480] sm:$0xff] %v374
        %522 = vst [vmem:[%s142 + $0x488] sm:$0xff] %v375
        %523 = vst [vmem:[%s142 + $0x490] sm:$0xff] %v376
        %s524 = sand.u32 %s52, 1
        %s525 = scalar_lea.sflag [#allocation4], %s524
        %s526 = sand.u32 %s52, 1
        %s527 = smul.addr %s526, 1176
        %s528 = scalar_lea.vmem [#allocation5], %s527
        // Predicated region
        $region29: #{tpu_custom_call.1} parent=23 // pred_check
          %p529 = pneg %p62
        $region30: #{tpu_custom_call.1} parent=23 // pred_check_branch
          %531 = sbr.rel (%p529) target = $region32
        $region31: #{tpu_custom_call.1} parent=23 // pred_region
          %s532 = smul.u32 3, %s18
          %s533 = ssub.s32 5, %s532
          %p534 = scmp.lt.s32.totalorder %s533, 3
          %s535 = scalar_select %p534, %s533, 3
          %s536 = smul.u32 128, %s535
          %s537 = smul.u32 %s536, 49
          %s539 = ssub.s32 18816, %s537
          %540 = vsyncadd %s525, %s539
          %p541 = scmp.ne.s32.totalorder 0, %s537
          %s542 = smul.addr %s532, 49
          %s543 = smul.addr %s542, 128
          %s544 = scalar_lea.hbm %s1, %s543
          %s545 = smul.u32 392, %s535
          %s546 = sshll.u32 %s528, 4
          %s547 = int_to_ptr.vmem [resolvable:$true] %s546
          %s548 = sshll.u32 %s545, 4
          %552 = dma.vmem_to_hbm [thread:$0]  (%p541), %s547, %s548, %s544, %s525, 6272, 6272, 392
        $region32: #{tpu_custom_call.1} parent=23 // pred_fallthru
          _
      $region24: #{tpu_custom_call.1} parent=5 // pred_fallthru
        _
      %p553 = scmp.le.s32.totalorder 2, %s13
      // Predicated region
      $region33: #{tpu_custom_call.1} parent=5 // pred_check
        %p554 = pneg %p553
      $region34: #{tpu_custom_call.1} parent=5 // pred_check_branch
        %556 = sbr.rel (%p554) target = $region36
      $region35: #{tpu_custom_call.1} parent=5 // pred_region
        %s557 = ssub.s32 %s13, 2
        // Predicated region
        $region37: #{tpu_custom_call.1} parent=35 // pred_check
          %p558 = pneg %p68
        $region38: #{tpu_custom_call.1} parent=35 // pred_check_branch
          %560 = sbr.rel (%p558) target = $region40
        $region39: #{tpu_custom_call.1} parent=35 // pred_region
          %s561 = sand.u32 %s53, 1
          %s562 = scalar_lea.sflag [#allocation4], %s561
          %s563 = sand.u32 %s53, 1
          %s564 = smul.addr %s563, 1176
          %s565 = scalar_lea.vmem [#allocation5], %s564
          %566 = dma.done %s562, 18816
        $region40: #{tpu_custom_call.1} parent=35 // pred_fallthru
          _
      $region36: #{tpu_custom_call.1} parent=5 // pred_fallthru
        _
    $region6: #{tpu_custom_call.1} parent=1 // loop_footer
      %s17 = sadd.s32 1, %s13
    $region7: #{tpu_custom_call.1} parent=1 // loop_footer_branch
      %12 = sbr.rel target = $region3
    $region8: #{tpu_custom_call.1} parent=1 // loop_exit
      _
    %567 = vsyncpa [#allocation3], 1
    %s568 = scalar_lea.sflag [#allocation3], 1
    %569 = vsyncpa %s568, 1
    %570 = vsyncpa [#allocation4], 1
    %s571 = scalar_lea.sflag [#allocation4], 1
    %572 = vsyncpa %s571, 1

</llo_original>
